<compile_context>
chip_gen: v6e
topology: v6e:2x2x1
jax: 0.10.0
libtpu: 0.0.40
codegen_flags: <defaults>
</compile_context>

<pallas_src>
import jax
import jax.numpy as jnp
from jax import lax
from jax.experimental import pallas as pl
from jax.experimental.pallas import tpu as pltpu

# ----------------------------- config (small) -----------------------------
VOCAB = 16        # synthetic vocab ('<PAD>' is index 0)
EMBED = 32        # embed_dim
HIDDEN = 32       # hidden_dim
NUM_CLASSES = 4
BATCH = 2
SEQ = 8

LANE = 128        # TPU lane width
SUBLANE = 8       # TPU sublane width


# ------------------------------ Pallas kernel ------------------------------
def lstm_fused_kernel(tok_ref,    # (T*Bp, 1) int32, flat row index = t*Bp + b
                      table_ref,  # (V, 4H)  f32: emb@W_ih + b, g-cols pre-scaled x2
                      w_hh_ref,   # (H, 4H)  f32: hidden -> gates, g-cols x2
                      fc_w_ref,   # (H, Cp)  f32, zero-padded to Cp=128 lanes
                      fc_b_ref,   # (1, Cp)  f32, zero-padded
                      out_ref):   # (Bp, Cp) f32 logits, lane-dense
    TBp = tok_ref.shape[0]
    Bp = out_ref.shape[0]
    T = TBp // Bp
    H = w_hh_ref.shape[0]
    V = table_ref.shape[0]

    w_hh = w_hh_ref[...]
    table = table_ref[...]

    # (1) "Gather" the input-side gates for every (t, b) at once with a single
    #     one-hot matmul against the precomputed (V, 4H) table: the whole
    #     input projection (and bias) lives outside the serial recurrence.
    #     Clamp ids so out-of-range tokens behave like jnp.take (clip).
    toks = jnp.clip(tok_ref[...], 0, V - 1)                       # (T*Bp, 1)
    vocab_ids = lax.broadcasted_iota(jnp.int32, (TBp, V), 1)      # (T*Bp, V)
    onehot = (vocab_ids == toks).astype(jnp.float32)
    x_gates = jnp.dot(onehot, table,
                      preferred_element_type=jnp.float32)         # (T*Bp, 4H)

    # (2) Fully unrolled recurrence (T static, LLO sees all steps): one MXU
    #     push (h @ W_hh) + ONE full-vreg sigmoid + one small tanh(c) per step.
    #     PyTorch gate order: input, forget, cell(g), output.  The g-gate
    #     columns of x_gates/w_hh are pre-scaled by 2 so
    #     tanh(g) == 2*sigmoid(2g) - 1 is recovered with a single VPU fma.
    h = jnp.zeros((Bp, H), jnp.float32)
    c = jnp.zeros((Bp, H), jnp.float32)
    for t in range(T):
        gates = x_gates[t * Bp:(t + 1) * Bp, :] + jnp.dot(
            h, w_hh, preferred_element_type=jnp.float32)          # (Bp, 4H)
        sig = jax.nn.sigmoid(gates)          # single full-vreg EUP pass
        i_g = sig[:, 0 * H:1 * H]
        f_g = sig[:, 1 * H:2 * H]
        g_g = 2.0 * sig[:, 2 * H:3 * H] - 1.0   # == tanh(original g gate)
        o_g = sig[:, 3 * H:4 * H]
        c = f_g * c + i_g * g_g
        h = o_g * jnp.tanh(c)

    # (3) Final Linear on the last hidden state; single unmasked lane-dense store.
    out_ref[...] = (jnp.dot(h, fc_w_ref[...],
                            preferred_element_type=jnp.float32)
                    + fc_b_ref[...]).astype(out_ref.dtype)


# --------------------------------- wrapper ---------------------------------
@jax.jit
def lstm_emotion_classifier(tokens, table, w_hh_mod, fc_w_p, fc_b_p):
    """tokens: (B, T) int32 -> logits (B, C) float32.

    All parameter-derived tensors (table, w_hh_mod, fc_w_p, fc_b_p) come from
    `prepare_params` and are computed once, not per call.
    """
    B, T = tokens.shape

    Bp = ((B + SUBLANE - 1) // SUBLANE) * SUBLANE   # pad batch to sublane width
    Cp = fc_w_p.shape[1]                            # lane-dense logits tile (128)

    # Per-call work: pad batch with PAD tokens (index 0) and flatten
    # time-major (row = t*Bp + b).  Tiny int32 ops, unavoidable per call.
    toks_p = jnp.zeros((Bp, T), jnp.int32).at[:B, :].set(tokens.astype(jnp.int32))
    toks_flat = jnp.transpose(toks_p, (1, 0)).reshape(T * Bp, 1)

    vmem = pl.BlockSpec(memory_space=pltpu.MemorySpace.VMEM)
    logits_p = pl.pallas_call(
        lstm_fused_kernel,
        out_shape=jax.ShapeDtypeStruct((Bp, Cp), jnp.float32),
        in_specs=[vmem] * 5,
        out_specs=vmem,
    )(toks_flat, table, w_hh_mod, fc_w_p, fc_b_p)

    return logits_p[:B, :NUM_CLASSES]


# --------------------------- param construction ---------------------------
def init_params(key):
    """Raw parameters, matching nn.Embedding / nn.LSTM / nn.Linear layout."""
    ks = jax.random.split(key, 7)
    scale = 1.0 / jnp.sqrt(HIDDEN)

    emb_w = jax.random.normal(ks[0], (VOCAB, EMBED), jnp.float32)
    emb_w = emb_w.at[0].set(0.0)  # padding_idx=0 row zeroed, as in nn.Embedding

    # PyTorch nn.LSTM stores weight_ih as (4H, E); we keep the (E, 4H)
    # transpose so the kernel does x @ W directly. Gate order i,f,g,o.
    w_ih = jax.random.uniform(ks[1], (EMBED, 4 * HIDDEN), jnp.float32,
                              -scale, scale)
    w_hh = jax.random.uniform(ks[2], (HIDDEN, 4 * HIDDEN), jnp.float32,
                              -scale, scale)
    b_ih = jax.random.uniform(ks[3], (4 * HIDDEN,), jnp.float32, -scale, scale)
    b_hh = jax.random.uniform(ks[4], (4 * HIDDEN,), jnp.float32, -scale, scale)

    fc_scale = 1.0 / jnp.sqrt(HIDDEN)
    fc_w = jax.random.uniform(ks[5], (HIDDEN, NUM_CLASSES), jnp.float32,
                              -fc_scale, fc_scale)
    fc_b = jax.random.uniform(ks[6], (1, NUM_CLASSES), jnp.float32,
                              -fc_scale, fc_scale)
    return emb_w, w_ih, w_hh, b_ih, b_hh, fc_w, fc_b


def prepare_params(emb_w, w_ih, w_hh, b_ih, b_hh, fc_w, fc_b):
    """One-time, out-of-the-hot-path parameter preparation.

    - Folds embedding + input projection + bias into one (V, 4H) gate table.
    - Pre-scales the g-gate columns of the table and of w_hh by 2 so the
      kernel can recover tanh(g) from the single sigmoid pass.
    - Zero-pads the FC weights/bias to a full 128-lane output tile.
    """
    H = w_hh.shape[0]
    C = fc_w.shape[1]

    table = emb_w @ w_ih + (b_ih + b_hh)[None, :]                 # (V, 4H)
    g_scale = jnp.ones((4 * H,), jnp.float32).at[2 * H:3 * H].set(2.0)
    table = table * g_scale[None, :]
    w_hh_mod = w_hh * g_scale[None, :]

    fc_w_p = jnp.zeros((H, LANE), jnp.float32).at[:, :C].set(fc_w)
    fc_b_p = jnp.zeros((1, LANE), jnp.float32).at[:, :C].set(fc_b)
    return table, w_hh_mod, fc_w_p, fc_b_p


# ------------------------- pure-JAX reference check ------------------------
def reference_forward(tokens, emb_w, w_ih, w_hh, b_ih, b_hh, fc_w, fc_b):
    x = jnp.take(emb_w, tokens, axis=0)              # (B, T, E)
    B, T, _ = x.shape
    H = w_hh.shape[0]
    b = (b_ih + b_hh)[None, :]
    h = jnp.zeros((B, H), jnp.float32)
    c = jnp.zeros((B, H), jnp.float32)
    for t in range(T):
        gates = x[:, t, :] @ w_ih + h @ w_hh + b
        i_g = jax.nn.sigmoid(gates[:, 0 * H:1 * H])
        f_g = jax.nn.sigmoid(gates[:, 1 * H:2 * H])
        g_g = jnp.tanh(gates[:, 2 * H:3 * H])
        o_g = jax.nn.sigmoid(gates[:, 3 * H:4 * H])
        c = f_g * c + i_g * g_g
        h = o_g * jnp.tanh(c)
    return h @ fc_w + fc_b


if __name__ == "__main__":
    key = jax.random.PRNGKey(0)
    k_tok, k_par = jax.random.split(key)

    tokens = jax.random.randint(k_tok, (BATCH, SEQ), 0, VOCAB, dtype=jnp.int32)
    raw_params = init_params(k_par)

    # One-time parameter prep (hoisted out of the per-call path).
    prepped = prepare_params(*raw_params)
    prepped = jax.block_until_ready(prepped)

    logits = lstm_emotion_classifier(tokens, *prepped)
    logits = jax.block_until_ready(logits)

    ref = reference_forward(tokens, *raw_params)
    assert logits.shape == (BATCH, NUM_CLASSES)
    assert jnp.allclose(logits, ref, atol=1e-4, rtol=1e-4), (
        f"mismatch: {logits} vs {ref}")

    print("KERNEL_OK")
</pallas_src>

<mosaic_0001>
module attributes {stable_mosaic.version = 11 : i64} {
  func.func @lstm_fused_kernel(%arg0: memref<64x1xi32, #tpu.memory_space<vmem>>, %arg1: memref<16x128xf32, #tpu.memory_space<vmem>>, %arg2: memref<32x128xf32, #tpu.memory_space<vmem>>, %arg3: memref<32x128xf32, #tpu.memory_space<vmem>>, %arg4: memref<1x128xf32, #tpu.memory_space<vmem>>, %arg5: memref<8x128xf32, #tpu.memory_space<vmem>>) attributes {dimension_semantics = [], scalar_prefetch = 0 : i64, scratch_operands = 0 : i64, tpu.core_type = #tpu.core_type<tc>} {
    %c0 = arith.constant 0 : index
    %c0_0 = arith.constant 0 : index
    %0 = vector.load %arg2[%c0, %c0_0] : memref<32x128xf32, #tpu.memory_space<vmem>>, vector<32x128xf32>
    %c0_1 = arith.constant 0 : index
    %c0_2 = arith.constant 0 : index
    %1 = vector.load %arg1[%c0_1, %c0_2] : memref<16x128xf32, #tpu.memory_space<vmem>>, vector<16x128xf32>
    %c0_3 = arith.constant 0 : index
    %c0_4 = arith.constant 0 : index
    %2 = vector.load %arg0[%c0_3, %c0_4] : memref<64x1xi32, #tpu.memory_space<vmem>>, vector<64x1xi32>
    %c0_i32 = arith.constant 0 : i32
    %c15_i32 = arith.constant 15 : i32
    %3 = vector.broadcast %c0_i32 : i32 to vector<64x1xi32>
    %4 = arith.maxsi %3, %2 : vector<64x1xi32>
    %5 = vector.broadcast %c15_i32 : i32 to vector<64x1xi32>
    %6 = arith.minsi %5, %4 : vector<64x1xi32>
    %7 = tpu.iota {dimensions = array<i32: 1>} : vector<64x16xi32>
    %8 = vector.broadcast %6 : vector<64x1xi32> to vector<64x16xi32>
    %9 = arith.cmpi eq, %7, %8 : vector<64x16xi32>
    %10 = arith.extui %9 : vector<64x16xi1> to vector<64x16xi32>
    %11 = arith.sitofp %10 : vector<64x16xi32> to vector<64x16xf32>
    %cst = arith.constant dense<0.000000e+00> : vector<64x128xf32>
    %12 = tpu.matmul %11, %1, %cst {dimension_numbers = #tpu.dot_dimension_numbers<[1], [0], [0], [1], [0, 0, 1, 1], [], []>} : vector<64x16xf32>, vector<16x128xf32>, vector<64x128xf32> -> vector<64x128xf32>
    %cst_5 = arith.constant 0.000000e+00 : f32
    %13 = vector.broadcast %cst_5 : f32 to vector<8x32xf32>
    %cst_6 = arith.constant 0.000000e+00 : f32
    %14 = vector.broadcast %cst_6 : f32 to vector<8x32xf32>
    %15 = vector.extract_strided_slice %12 {offsets = [0, 0], sizes = [8, 128], strides = [1, 1]} : vector<64x128xf32> to vector<8x128xf32>
    %cst_7 = arith.constant dense<0.000000e+00> : vector<8x128xf32>
    %16 = tpu.matmul %13, %0, %cst_7 {dimension_numbers = #tpu.dot_dimension_numbers<[1], [0], [0], [1], [0, 0, 1, 1], [], []>} : vector<8x32xf32>, vector<32x128xf32>, vector<8x128xf32> -> vector<8x128xf32>
    %17 = arith.addf %15, %16 : vector<8x128xf32>
    %18 = arith.negf %17 : vector<8x128xf32>
    %19 = math.exp %18 : vector<8x128xf32>
    %cst_8 = arith.constant 1.000000e+00 : f32
    %20 = vector.broadcast %cst_8 : f32 to vector<8x128xf32>
    %21 = arith.addf %20, %19 : vector<8x128xf32>
    %22 = arith.divf %20, %21 : vector<8x128xf32>
    %23 = vector.extract_strided_slice %22 {offsets = [0, 0], sizes = [8, 32], strides = [1, 1]} : vector<8x128xf32> to vector<8x32xf32>
    %24 = vector.extract_strided_slice %22 {offsets = [0, 32], sizes = [8, 32], strides = [1, 1]} : vector<8x128xf32> to vector<8x32xf32>
    %25 = vector.extract_strided_slice %22 {offsets = [0, 64], sizes = [8, 32], strides = [1, 1]} : vector<8x128xf32> to vector<8x32xf32>
    %cst_9 = arith.constant 2.000000e+00 : f32
    %26 = vector.broadcast %cst_9 : f32 to vector<8x32xf32>
    %27 = arith.mulf %26, %25 : vector<8x32xf32>
    %cst_10 = arith.constant 1.000000e+00 : f32
    %28 = vector.broadcast %cst_10 : f32 to vector<8x32xf32>
    %29 = arith.subf %27, %28 : vector<8x32xf32>
    %30 = vector.extract_strided_slice %22 {offsets = [0, 96], sizes = [8, 32], strides = [1, 1]} : vector<8x128xf32> to vector<8x32xf32>
    %31 = arith.mulf %24, %14 : vector<8x32xf32>
    %32 = arith.mulf %23, %29 : vector<8x32xf32>
    %33 = arith.addf %31, %32 : vector<8x32xf32>
    %34 = math.tanh %33 : vector<8x32xf32>
    %35 = arith.mulf %30, %34 : vector<8x32xf32>
    %36 = vector.extract_strided_slice %12 {offsets = [8, 0], sizes = [8, 128], strides = [1, 1]} : vector<64x128xf32> to vector<8x128xf32>
    %cst_11 = arith.constant dense<0.000000e+00> : vector<8x128xf32>
    %37 = tpu.matmul %35, %0, %cst_11 {dimension_numbers = #tpu.dot_dimension_numbers<[1], [0], [0], [1], [0, 0, 1, 1], [], []>} : vector<8x32xf32>, vector<32x128xf32>, vector<8x128xf32> -> vector<8x128xf32>
    %38 = arith.addf %36, %37 : vector<8x128xf32>
    %39 = arith.negf %38 : vector<8x128xf32>
    %40 = math.exp %39 : vector<8x128xf32>
    %cst_12 = arith.constant 1.000000e+00 : f32
    %41 = vector.broadcast %cst_12 : f32 to vector<8x128xf32>
    %42 = arith.addf %41, %40 : vector<8x128xf32>
    %43 = arith.divf %41, %42 : vector<8x128xf32>
    %44 = vector.extract_strided_slice %43 {offsets = [0, 0], sizes = [8, 32], strides = [1, 1]} : vector<8x128xf32> to vector<8x32xf32>
    %45 = vector.extract_strided_slice %43 {offsets = [0, 32], sizes = [8, 32], strides = [1, 1]} : vector<8x128xf32> to vector<8x32xf32>
    %46 = vector.extract_strided_slice %43 {offsets = [0, 64], sizes = [8, 32], strides = [1, 1]} : vector<8x128xf32> to vector<8x32xf32>
    %cst_13 = arith.constant 2.000000e+00 : f32
    %47 = vector.broadcast %cst_13 : f32 to vector<8x32xf32>
    %48 = arith.mulf %47, %46 : vector<8x32xf32>
    %cst_14 = arith.constant 1.000000e+00 : f32
    %49 = vector.broadcast %cst_14 : f32 to vector<8x32xf32>
    %50 = arith.subf %48, %49 : vector<8x32xf32>
    %51 = vector.extract_strided_slice %43 {offsets = [0, 96], sizes = [8, 32], strides = [1, 1]} : vector<8x128xf32> to vector<8x32xf32>
    %52 = arith.mulf %45, %33 : vector<8x32xf32>
    %53 = arith.mulf %44, %50 : vector<8x32xf32>
    %54 = arith.addf %52, %53 : vector<8x32xf32>
    %55 = math.tanh %54 : vector<8x32xf32>
    %56 = arith.mulf %51, %55 : vector<8x32xf32>
    %57 = vector.extract_strided_slice %12 {offsets = [16, 0], sizes = [8, 128], strides = [1, 1]} : vector<64x128xf32> to vector<8x128xf32>
    %cst_15 = arith.constant dense<0.000000e+00> : vector<8x128xf32>
    %58 = tpu.matmul %56, %0, %cst_15 {dimension_numbers = #tpu.dot_dimension_numbers<[1], [0], [0], [1], [0, 0, 1, 1], [], []>} : vector<8x32xf32>, vector<32x128xf32>, vector<8x128xf32> -> vector<8x128xf32>
    %59 = arith.addf %57, %58 : vector<8x128xf32>
    %60 = arith.negf %59 : vector<8x128xf32>
    %61 = math.exp %60 : vector<8x128xf32>
    %cst_16 = arith.constant 1.000000e+00 : f32
    %62 = vector.broadcast %cst_16 : f32 to vector<8x128xf32>
    %63 = arith.addf %62, %61 : vector<8x128xf32>
    %64 = arith.divf %62, %63 : vector<8x128xf32>
    %65 = vector.extract_strided_slice %64 {offsets = [0, 0], sizes = [8, 32], strides = [1, 1]} : vector<8x128xf32> to vector<8x32xf32>
    %66 = vector.extract_strided_slice %64 {offsets = [0, 32], sizes = [8, 32], strides = [1, 1]} : vector<8x128xf32> to vector<8x32xf32>
    %67 = vector.extract_strided_slice %64 {offsets = [0, 64], sizes = [8, 32], strides = [1, 1]} : vector<8x128xf32> to vector<8x32xf32>
    %cst_17 = arith.constant 2.000000e+00 : f32
    %68 = vector.broadcast %cst_17 : f32 to vector<8x32xf32>
    %69 = arith.mulf %68, %67 : vector<8x32xf32>
    %cst_18 = arith.constant 1.000000e+00 : f32
    %70 = vector.broadcast %cst_18 : f32 to vector<8x32xf32>
    %71 = arith.subf %69, %70 : vector<8x32xf32>
    %72 = vector.extract_strided_slice %64 {offsets = [0, 96], sizes = [8, 32], strides = [1, 1]} : vector<8x128xf32> to vector<8x32xf32>
    %73 = arith.mulf %66, %54 : vector<8x32xf32>
    %74 = arith.mulf %65, %71 : vector<8x32xf32>
    %75 = arith.addf %73, %74 : vector<8x32xf32>
    %76 = math.tanh %75 : vector<8x32xf32>
    %77 = arith.mulf %72, %76 : vector<8x32xf32>
    %78 = vector.extract_strided_slice %12 {offsets = [24, 0], sizes = [8, 128], strides = [1, 1]} : vector<64x128xf32> to vector<8x128xf32>
    %cst_19 = arith.constant dense<0.000000e+00> : vector<8x128xf32>
    %79 = tpu.matmul %77, %0, %cst_19 {dimension_numbers = #tpu.dot_dimension_numbers<[1], [0], [0], [1], [0, 0, 1, 1], [], []>} : vector<8x32xf32>, vector<32x128xf32>, vector<8x128xf32> -> vector<8x128xf32>
    %80 = arith.addf %78, %79 : vector<8x128xf32>
    %81 = arith.negf %80 : vector<8x128xf32>
    %82 = math.exp %81 : vector<8x128xf32>
    %cst_20 = arith.constant 1.000000e+00 : f32
    %83 = vector.broadcast %cst_20 : f32 to vector<8x128xf32>
    %84 = arith.addf %83, %82 : vector<8x128xf32>
    %85 = arith.divf %83, %84 : vector<8x128xf32>
    %86 = vector.extract_strided_slice %85 {offsets = [0, 0], sizes = [8, 32], strides = [1, 1]} : vector<8x128xf32> to vector<8x32xf32>
    %87 = vector.extract_strided_slice %85 {offsets = [0, 32], sizes = [8, 32], strides = [1, 1]} : vector<8x128xf32> to vector<8x32xf32>
    %88 = vector.extract_strided_slice %85 {offsets = [0, 64], sizes = [8, 32], strides = [1, 1]} : vector<8x128xf32> to vector<8x32xf32>
    %cst_21 = arith.constant 2.000000e+00 : f32
    %89 = vector.broadcast %cst_21 : f32 to vector<8x32xf32>
    %90 = arith.mulf %89, %88 : vector<8x32xf32>
    %cst_22 = arith.constant 1.000000e+00 : f32
    %91 = vector.broadcast %cst_22 : f32 to vector<8x32xf32>
    %92 = arith.subf %90, %91 : vector<8x32xf32>
    %93 = vector.extract_strided_slice %85 {offsets = [0, 96], sizes = [8, 32], strides = [1, 1]} : vector<8x128xf32> to vector<8x32xf32>
    %94 = arith.mulf %87, %75 : vector<8x32xf32>
    %95 = arith.mulf %86, %92 : vector<8x32xf32>
    %96 = arith.addf %94, %95 : vector<8x32xf32>
    %97 = math.tanh %96 : vector<8x32xf32>
    %98 = arith.mulf %93, %97 : vector<8x32xf32>
    %99 = vector.extract_strided_slice %12 {offsets = [32, 0], sizes = [8, 128], strides = [1, 1]} : vector<64x128xf32> to vector<8x128xf32>
    %cst_23 = arith.constant dense<0.000000e+00> : vector<8x128xf32>
    %100 = tpu.matmul %98, %0, %cst_23 {dimension_numbers = #tpu.dot_dimension_numbers<[1], [0], [0], [1], [0, 0, 1, 1], [], []>} : vector<8x32xf32>, vector<32x128xf32>, vector<8x128xf32> -> vector<8x128xf32>
    %101 = arith.addf %99, %100 : vector<8x128xf32>
    %102 = arith.negf %101 : vector<8x128xf32>
    %103 = math.exp %102 : vector<8x128xf32>
    %cst_24 = arith.constant 1.000000e+00 : f32
    %104 = vector.broadcast %cst_24 : f32 to vector<8x128xf32>
    %105 = arith.addf %104, %103 : vector<8x128xf32>
    %106 = arith.divf %104, %105 : vector<8x128xf32>
    %107 = vector.extract_strided_slice %106 {offsets = [0, 0], sizes = [8, 32], strides = [1, 1]} : vector<8x128xf32> to vector<8x32xf32>
    %108 = vector.extract_strided_slice %106 {offsets = [0, 32], sizes = [8, 32], strides = [1, 1]} : vector<8x128xf32> to vector<8x32xf32>
    %109 = vector.extract_strided_slice %106 {offsets = [0, 64], sizes = [8, 32], strides = [1, 1]} : vector<8x128xf32> to vector<8x32xf32>
    %cst_25 = arith.constant 2.000000e+00 : f32
    %110 = vector.broadcast %cst_25 : f32 to vector<8x32xf32>
    %111 = arith.mulf %110, %109 : vector<8x32xf32>
    %cst_26 = arith.constant 1.000000e+00 : f32
    %112 = vector.broadcast %cst_26 : f32 to vector<8x32xf32>
    %113 = arith.subf %111, %112 : vector<8x32xf32>
    %114 = vector.extract_strided_slice %106 {offsets = [0, 96], sizes = [8, 32], strides = [1, 1]} : vector<8x128xf32> to vector<8x32xf32>
    %115 = arith.mulf %108, %96 : vector<8x32xf32>
    %116 = arith.mulf %107, %113 : vector<8x32xf32>
    %117 = arith.addf %115, %116 : vector<8x32xf32>
    %118 = math.tanh %117 : vector<8x32xf32>
    %119 = arith.mulf %114, %118 : vector<8x32xf32>
    %120 = vector.extract_strided_slice %12 {offsets = [40, 0], sizes = [8, 128], strides = [1, 1]} : vector<64x128xf32> to vector<8x128xf32>
    %cst_27 = arith.constant dense<0.000000e+00> : vector<8x128xf32>
    %121 = tpu.matmul %119, %0, %cst_27 {dimension_numbers = #tpu.dot_dimension_numbers<[1], [0], [0], [1], [0, 0, 1, 1], [], []>} : vector<8x32xf32>, vector<32x128xf32>, vector<8x128xf32> -> vector<8x128xf32>
    %122 = arith.addf %120, %121 : vector<8x128xf32>
    %123 = arith.negf %122 : vector<8x128xf32>
    %124 = math.exp %123 : vector<8x128xf32>
    %cst_28 = arith.constant 1.000000e+00 : f32
    %125 = vector.broadcast %cst_28 : f32 to vector<8x128xf32>
    %126 = arith.addf %125, %124 : vector<8x128xf32>
    %127 = arith.divf %125, %126 : vector<8x128xf32>
    %128 = vector.extract_strided_slice %127 {offsets = [0, 0], sizes = [8, 32], strides = [1, 1]} : vector<8x128xf32> to vector<8x32xf32>
    %129 = vector.extract_strided_slice %127 {offsets = [0, 32], sizes = [8, 32], strides = [1, 1]} : vector<8x128xf32> to vector<8x32xf32>
    %130 = vector.extract_strided_slice %127 {offsets = [0, 64], sizes = [8, 32], strides = [1, 1]} : vector<8x128xf32> to vector<8x32xf32>
    %cst_29 = arith.constant 2.000000e+00 : f32
    %131 = vector.broadcast %cst_29 : f32 to vector<8x32xf32>
    %132 = arith.mulf %131, %130 : vector<8x32xf32>
    %cst_30 = arith.constant 1.000000e+00 : f32
    %133 = vector.broadcast %cst_30 : f32 to vector<8x32xf32>
    %134 = arith.subf %132, %133 : vector<8x32xf32>
    %135 = vector.extract_strided_slice %127 {offsets = [0, 96], sizes = [8, 32], strides = [1, 1]} : vector<8x128xf32> to vector<8x32xf32>
    %136 = arith.mulf %129, %117 : vector<8x32xf32>
    %137 = arith.mulf %128, %134 : vector<8x32xf32>
    %138 = arith.addf %136, %137 : vector<8x32xf32>
    %139 = math.tanh %138 : vector<8x32xf32>
    %140 = arith.mulf %135, %139 : vector<8x32xf32>
    %141 = vector.extract_strided_slice %12 {offsets = [48, 0], sizes = [8, 128], strides = [1, 1]} : vector<64x128xf32> to vector<8x128xf32>
    %cst_31 = arith.constant dense<0.000000e+00> : vector<8x128xf32>
    %142 = tpu.matmul %140, %0, %cst_31 {dimension_numbers = #tpu.dot_dimension_numbers<[1], [0], [0], [1], [0, 0, 1, 1], [], []>} : vector<8x32xf32>, vector<32x128xf32>, vector<8x128xf32> -> vector<8x128xf32>
    %143 = arith.addf %141, %142 : vector<8x128xf32>
    %144 = arith.negf %143 : vector<8x128xf32>
    %145 = math.exp %144 : vector<8x128xf32>
    %cst_32 = arith.constant 1.000000e+00 : f32
    %146 = vector.broadcast %cst_32 : f32 to vector<8x128xf32>
    %147 = arith.addf %146, %145 : vector<8x128xf32>
    %148 = arith.divf %146, %147 : vector<8x128xf32>
    %149 = vector.extract_strided_slice %148 {offsets = [0, 0], sizes = [8, 32], strides = [1, 1]} : vector<8x128xf32> to vector<8x32xf32>
    %150 = vector.extract_strided_slice %148 {offsets = [0, 32], sizes = [8, 32], strides = [1, 1]} : vector<8x128xf32> to vector<8x32xf32>
    %151 = vector.extract_strided_slice %148 {offsets = [0, 64], sizes = [8, 32], strides = [1, 1]} : vector<8x128xf32> to vector<8x32xf32>
    %cst_33 = arith.constant 2.000000e+00 : f32
    %152 = vector.broadcast %cst_33 : f32 to vector<8x32xf32>
    %153 = arith.mulf %152, %151 : vector<8x32xf32>
    %cst_34 = arith.constant 1.000000e+00 : f32
    %154 = vector.broadcast %cst_34 : f32 to vector<8x32xf32>
    %155 = arith.subf %153, %154 : vector<8x32xf32>
    %156 = vector.extract_strided_slice %148 {offsets = [0, 96], sizes = [8, 32], strides = [1, 1]} : vector<8x128xf32> to vector<8x32xf32>
    %157 = arith.mulf %150, %138 : vector<8x32xf32>
    %158 = arith.mulf %149, %155 : vector<8x32xf32>
    %159 = arith.addf %157, %158 : vector<8x32xf32>
    %160 = math.tanh %159 : vector<8x32xf32>
    %161 = arith.mulf %156, %160 : vector<8x32xf32>
    %162 = vector.extract_strided_slice %12 {offsets = [56, 0], sizes = [8, 128], strides = [1, 1]} : vector<64x128xf32> to vector<8x128xf32>
    %cst_35 = arith.constant dense<0.000000e+00> : vector<8x128xf32>
    %163 = tpu.matmul %161, %0, %cst_35 {dimension_numbers = #tpu.dot_dimension_numbers<[1], [0], [0], [1], [0, 0, 1, 1], [], []>} : vector<8x32xf32>, vector<32x128xf32>, vector<8x128xf32> -> vector<8x128xf32>
    %164 = arith.addf %162, %163 : vector<8x128xf32>
    %165 = arith.negf %164 : vector<8x128xf32>
    %166 = math.exp %165 : vector<8x128xf32>
    %cst_36 = arith.constant 1.000000e+00 : f32
    %167 = vector.broadcast %cst_36 : f32 to vector<8x128xf32>
    %168 = arith.addf %167, %166 : vector<8x128xf32>
    %169 = arith.divf %167, %168 : vector<8x128xf32>
    %170 = vector.extract_strided_slice %169 {offsets = [0, 0], sizes = [8, 32], strides = [1, 1]} : vector<8x128xf32> to vector<8x32xf32>
    %171 = vector.extract_strided_slice %169 {offsets = [0, 32], sizes = [8, 32], strides = [1, 1]} : vector<8x128xf32> to vector<8x32xf32>
    %172 = vector.extract_strided_slice %169 {offsets = [0, 64], sizes = [8, 32], strides = [1, 1]} : vector<8x128xf32> to vector<8x32xf32>
    %cst_37 = arith.constant 2.000000e+00 : f32
    %173 = vector.broadcast %cst_37 : f32 to vector<8x32xf32>
    %174 = arith.mulf %173, %172 : vector<8x32xf32>
    %cst_38 = arith.constant 1.000000e+00 : f32
    %175 = vector.broadcast %cst_38 : f32 to vector<8x32xf32>
    %176 = arith.subf %174, %175 : vector<8x32xf32>
    %177 = vector.extract_strided_slice %169 {offsets = [0, 96], sizes = [8, 32], strides = [1, 1]} : vector<8x128xf32> to vector<8x32xf32>
    %178 = arith.mulf %171, %159 : vector<8x32xf32>
    %179 = arith.mulf %170, %176 : vector<8x32xf32>
    %180 = arith.addf %178, %179 : vector<8x32xf32>
    %181 = math.tanh %180 : vector<8x32xf32>
    %182 = arith.mulf %177, %181 : vector<8x32xf32>
    %c0_39 = arith.constant 0 : index
    %c0_40 = arith.constant 0 : index
    %183 = vector.load %arg3[%c0_39, %c0_40] : memref<32x128xf32, #tpu.memory_space<vmem>>, vector<32x128xf32>
    %cst_41 = arith.constant dense<0.000000e+00> : vector<8x128xf32>
    %184 = tpu.matmul %182, %183, %cst_41 {dimension_numbers = #tpu.dot_dimension_numbers<[1], [0], [0], [1], [0, 0, 1, 1], [], []>} : vector<8x32xf32>, vector<32x128xf32>, vector<8x128xf32> -> vector<8x128xf32>
    %c0_42 = arith.constant 0 : index
    %c0_43 = arith.constant 0 : index
    %185 = vector.load %arg4[%c0_42, %c0_43] : memref<1x128xf32, #tpu.memory_space<vmem>>, vector<1x128xf32>
    %186 = vector.broadcast %185 : vector<1x128xf32> to vector<8x128xf32>
    %187 = arith.addf %184, %186 : vector<8x128xf32>
    %c0_44 = arith.constant 0 : index
    %c0_45 = arith.constant 0 : index
    %188 = vector.load %arg5[%c0_44, %c0_45] : memref<8x128xf32, #tpu.memory_space<vmem>>, vector<8x128xf32>
    tpu.vector_store %arg5[%c0_44, %c0_45], %187 {strides = array<i32>} : memref<8x128xf32, #tpu.memory_space<vmem>>, vector<8x128xf32>,
    return
  }
}

</mosaic_0001>

<llo_original>
// kernel: lstm_emotion_classifier.1
$region0: #{lstm_emotion_classifier.1}
  #allocation0 [shape = 'u32[]', space=smem, size = 0x4, offset = 0x4, fixed_abs, tag = 'smem constant byte address 0x4 - core index']
  #allocation1 [shape = 'u32[144,128]{1,0:T(1,128)}', space=vmem, size = 0x12000, scoped, tag = 'internal scratch']
  %s0 = inlined_call_operand.vmem [shape: s32[64,1], index: 0, kind: input, shape index: {}]
  %s1 = inlined_call_operand.vmem [shape: f32[16,128], index: 1, kind: input, shape index: {}]
  %s2 = inlined_call_operand.vmem [shape: f32[32,128], index: 2, kind: input, shape index: {}]
  %s3 = inlined_call_operand.vmem [shape: f32[32,128], index: 3, kind: input, shape index: {}]
  %s4 = inlined_call_operand.vmem [shape: f32[1,128], index: 4, kind: input, shape index: {}]
  %s5 = inlined_call_operand.vmem [shape: f32[8,128], index: 5, kind: output, shape index: {}]
  %s6 = sld [smem:[#allocation0]]
  $region30: #{lstm_emotion_classifier.1} parent=0
    _
  %s8 = ssub.s32 1, %s6
  %s9 = scalar_select 0, %s8, %s6
  // Predicated region
  $region2: #{lstm_emotion_classifier.1} parent=0 // pred_check
    _
  $region3: #{lstm_emotion_classifier.1} parent=0 // pred_check_branch
    %11 = sbr.rel (0) target = $region5
  $region4: #{lstm_emotion_classifier.1} parent=0 // pred_region
    _
  $region5: #{lstm_emotion_classifier.1} parent=0 // pred_fallthru
    _
  // Predicated region
  $region6: #{lstm_emotion_classifier.1} parent=0 // pred_check
    _
  $region7: #{lstm_emotion_classifier.1} parent=0 // pred_check_branch
    %13 = sbr.rel (0) target = $region9
  $region8: #{lstm_emotion_classifier.1} parent=0 // pred_region
    _
  $region9: #{lstm_emotion_classifier.1} parent=0 // pred_fallthru
    _
  // Predicated region
  $region10: #{lstm_emotion_classifier.1} parent=0 // pred_check
    _
  $region11: #{lstm_emotion_classifier.1} parent=0 // pred_check_branch
    %15 = sbr.rel (0) target = $region13
  $region12: #{lstm_emotion_classifier.1} parent=0 // pred_region
    _
  $region13: #{lstm_emotion_classifier.1} parent=0 // pred_fallthru
    _
  // Predicated region
  $region14: #{lstm_emotion_classifier.1} parent=0 // pred_check
    _
  $region15: #{lstm_emotion_classifier.1} parent=0 // pred_check_branch
    %17 = sbr.rel (0) target = $region17
  $region16: #{lstm_emotion_classifier.1} parent=0 // pred_region
    _
  $region17: #{lstm_emotion_classifier.1} parent=0 // pred_fallthru
    _
  // Predicated region
  $region18: #{lstm_emotion_classifier.1} parent=0 // pred_check
    _
  $region19: #{lstm_emotion_classifier.1} parent=0 // pred_check_branch
    %19 = sbr.rel (0) target = $region21
  $region20: #{lstm_emotion_classifier.1} parent=0 // pred_region
    _
  $region21: #{lstm_emotion_classifier.1} parent=0 // pred_fallthru
    _
  %v20 = vld [vmem:[%s2] sm:$0xff]
  %v21 = vld [vmem:[%s2 + $0x8] sm:$0xff]
  %v22 = vld [vmem:[%s2 + $0x10] sm:$0xff]
  %v23 = vld [vmem:[%s2 + $0x18] sm:$0xff]
  %v24 = vld [vmem:[%s1] sm:$0xff]
  %v25 = vld [vmem:[%s1 + $0x8] sm:$0xff]
  %v26 = vld [vmem:[%s0] sm:$0xff]
  %v27 = vld [vmem:[%s0 + $0x8] sm:$0xff]
  %v28 = vld [vmem:[%s0 + $0x10] sm:$0xff]
  %v29 = vld [vmem:[%s0 + $0x18] sm:$0xff]
  %v30 = vld [vmem:[%s0 + $0x20] sm:$0xff]
  %v31 = vld [vmem:[%s0 + $0x28] sm:$0xff]
  %v32 = vld [vmem:[%s0 + $0x30] sm:$0xff]
  %v33 = vld [vmem:[%s0 + $0x38] sm:$0xff]
  %vm34 = vcmp.gt.s32.totalorder %v26, 0
  %v35 = vsel %vm34, %v26, 0
  %vm36 = vcmp.gt.s32.totalorder %v27, 0
  %v37 = vsel %vm36, %v27, 0
  %vm38 = vcmp.gt.s32.totalorder %v28, 0
  %v39 = vsel %vm38, %v28, 0
  %vm40 = vcmp.gt.s32.totalorder %v29, 0
  %v41 = vsel %vm40, %v29, 0
  %vm42 = vcmp.gt.s32.totalorder %v30, 0
  %v43 = vsel %vm42, %v30, 0
  %vm44 = vcmp.gt.s32.totalorder %v31, 0
  %v45 = vsel %vm44, %v31, 0
  %vm46 = vcmp.gt.s32.totalorder %v32, 0
  %v47 = vsel %vm46, %v32, 0
  %vm48 = vcmp.gt.s32.totalorder %v33, 0
  %v49 = vsel %vm48, %v33, 0
  %vm50 = vcmp.lt.s32.totalorder %v35, 15
  %v51 = vsel %vm50, %v35, 15
  %vm52 = vcmp.lt.s32.totalorder %v37, 15
  %v53 = vsel %vm52, %v37, 15
  %vm54 = vcmp.lt.s32.totalorder %v39, 15
  %v55 = vsel %vm54, %v39, 15
  %vm56 = vcmp.lt.s32.totalorder %v41, 15
  %v57 = vsel %vm56, %v41, 15
  %vm58 = vcmp.lt.s32.totalorder %v43, 15
  %v59 = vsel %vm58, %v43, 15
  %vm60 = vcmp.lt.s32.totalorder %v45, 15
  %v61 = vsel %vm60, %v45, 15
  %vm62 = vcmp.lt.s32.totalorder %v47, 15
  %v63 = vsel %vm62, %v47, 15
  %vm64 = vcmp.lt.s32.totalorder %v49, 15
  %v65 = vsel %vm64, %v49, 15
  %v66 = vlaneseq
  %v67 = vand.u32 %v66, 127
  %68 = vset.pattern.permute.xlu0 0
  %69 = vperm.xlu0 %68, %v51
  %v70 = vpop.permute.xlu0 %69
  %71 = vset.pattern.permute.xlu0 0
  %72 = vperm.xlu0 %71, %v53
  %v73 = vpop.permute.xlu0 %72
  %74 = vset.pattern.permute.xlu0 0
  %75 = vperm.xlu0 %74, %v55
  %v76 = vpop.permute.xlu0 %75
  %77 = vset.pattern.permute.xlu0 0
  %78 = vperm.xlu0 %77, %v57
  %v79 = vpop.permute.xlu0 %78
  %80 = vset.pattern.permute.xlu0 0
  %81 = vperm.xlu0 %80, %v59
  %v82 = vpop.permute.xlu0 %81
  %83 = vset.pattern.permute.xlu0 0
  %84 = vperm.xlu0 %83, %v61
  %v85 = vpop.permute.xlu0 %84
  %86 = vset.pattern.permute.xlu0 0
  %87 = vperm.xlu0 %86, %v63
  %v88 = vpop.permute.xlu0 %87
  %89 = vset.pattern.permute.xlu0 0
  %90 = vperm.xlu0 %89, %v65
  %v91 = vpop.permute.xlu0 %90
  %vm92 = vcmp.eq.s32.totalorder %v67, %v70
  %vm93 = vcmp.eq.s32.totalorder %v67, %v73
  %vm94 = vcmp.eq.s32.totalorder %v67, %v76
  %vm95 = vcmp.eq.s32.totalorder %v67, %v79
  %vm96 = vcmp.eq.s32.totalorder %v67, %v82
  %vm97 = vcmp.eq.s32.totalorder %v67, %v85
  %vm98 = vcmp.eq.s32.totalorder %v67, %v88
  %vm99 = vcmp.eq.s32.totalorder %v67, %v91
  %v100 = vsel %vm92, 1, 0
  %v101 = vsel %vm93, 1, 0
  %v102 = vsel %vm94, 1, 0
  %v103 = vsel %vm95, 1, 0
  %v104 = vsel %vm96, 1, 0
  %v105 = vsel %vm97, 1, 0
  %v106 = vsel %vm98, 1, 0
  %v107 = vsel %vm99, 1, 0
  %v108 = vcvt.s32.f32 %v100
  %v109 = vcvt.s32.f32 %v101
  %v110 = vcvt.s32.f32 %v102
  %v111 = vcvt.s32.f32 %v103
  %v112 = vcvt.s32.f32 %v104
  %v113 = vcvt.s32.f32 %v105
  %v114 = vcvt.s32.f32 %v106
  %v115 = vcvt.s32.f32 %v107
  %vm116 = vcmask 130048
  %v118 = vsel %vm116, %v108, 0
  %v121 = vsel %vm116, %v109, 0
  %v124 = vsel %vm116, %v110, 0
  %v127 = vsel %vm116, %v111, 0
  %v130 = vsel %vm116, %v112, 0
  %v133 = vsel %vm116, %v113, 0
  %v136 = vsel %vm116, %v114, 0
  %v139 = vsel %vm116, %v115, 0
  %141 = vmatprep.subr.mxu0 0.0
  %142 = vmatpush1.msra.mxu0 0.0
  %143 = vmatprep.subr.mxu0 0.0
  %144 = vmatpush1.msra.mxu0 0.0
  %145 = vmatprep.subr.mxu0 0.0
  %146 = vmatpush1.msra.mxu0 0.0
  %147 = vmatprep.subr.mxu0 0.0
  %148 = vmatpush1.msra.mxu0 0.0
  %149 = vmatprep.subr.mxu0 0.0
  %150 = vmatpush1.msra.mxu0 0.0
  %151 = vmatprep.subr.mxu0 0.0
  %152 = vmatpush1.msra.mxu0 0.0
  %153 = vmatprep.subr.mxu0 0.0
  %154 = vmatpush1.msra.mxu0 0.0
  %155 = vmatprep.subr.mxu0 0.0
  %156 = vmatpush1.msra.mxu0 0.0
  %157 = vmatprep.subr.mxu0 0.0
  %158 = vmatpush1.msra.mxu0 0.0
  %159 = vmatprep.subr.mxu0 0.0
  %160 = vmatpush1.msra.mxu0 0.0
  %161 = vmatprep.subr.mxu0 0.0
  %162 = vmatpush1.msra.mxu0 0.0
  %163 = vmatprep.subr.mxu0 0.0
  %164 = vmatpush1.msra.mxu0 0.0
  %165 = vmatprep.subr.mxu0 0.0
  %166 = vmatpush1.msra.mxu0 0.0
  %167 = vmatprep.subr.mxu0 0.0
  %168 = vmatpush1.msra.mxu0 0.0
  %169 = vmatprep.subr.mxu0 0.0
  %170 = vmatpush1.msra.mxu0 %v25
  %171 = vmatprep.subr.mxu0 0.0
  %172 = vmatpush1.msra.mxu0 %v24
  %173 = vmatprep.subr.mxu0 0.0
  %174 = vmatpush2.msra.mxu0 0.0
  %175 = vmatprep.subr.mxu0 0.0
  %176 = vmatpush2.msra.mxu0 0.0
  %177 = vmatprep.subr.mxu0 0.0
  %178 = vmatpush2.msra.mxu0 0.0
  %179 = vmatprep.subr.mxu0 0.0
  %180 = vmatpush2.msra.mxu0 0.0
  %181 = vmatprep.subr.mxu0 0.0
  %182 = vmatpush2.msra.mxu0 0.0
  %183 = vmatprep.subr.mxu0 0.0
  %184 = vmatpush2.msra.mxu0 0.0
  %185 = vmatprep.subr.mxu0 0.0
  %186 = vmatpush2.msra.mxu0 0.0
  %187 = vmatprep.subr.mxu0 0.0
  %188 = vmatpush2.msra.mxu0 0.0
  %189 = vmatprep.subr.mxu0 0.0
  %190 = vmatpush2.msra.mxu0 0.0
  %191 = vmatprep.subr.mxu0 0.0
  %192 = vmatpush2.msra.mxu0 0.0
  %193 = vmatprep.subr.mxu0 0.0
  %194 = vmatpush2.msra.mxu0 0.0
  %195 = vmatprep.subr.mxu0 0.0
  %196 = vmatpush2.msra.mxu0 0.0
  %197 = vmatprep.subr.mxu0 0.0
  %198 = vmatpush2.msra.mxu0 0.0
  %199 = vmatprep.subr.mxu0 0.0
  %200 = vmatpush2.msra.mxu0 0.0
  %201 = vmatprep.subr.mxu0 0.0
  %202 = vmatpush2.msra.mxu0 0.0
  %203 = vmatprep.subr.mxu0 0.0
  %204 = vmatpush2.msra.mxu0 0.0
  %205 = vmatprep.mubr.f32.mxu0 0.0
  %206 = vmatmul.mubr.f32.gmra.mxu0 %v118
  %v207 = vpop.f32.mrf.mxu0
  %v208 = vadd.f32 0.0, %v207
  %v209 = vpop.f32.mrf.mxu0
  %210 = vmatprep.mubr.f32.mxu0 0.0
  %211 = vmatmul.mubr.f32.gmra.mxu0 %v121
  %v212 = vpop.f32.mrf.mxu0
  %v213 = vadd.f32 0.0, %v212
  %v214 = vpop.f32.mrf.mxu0
  %215 = vmatprep.mubr.f32.mxu0 0.0
  %216 = vmatmul.mubr.f32.gmra.mxu0 %v124
  %v217 = vpop.f32.mrf.mxu0
  %v218 = vadd.f32 0.0, %v217
  %v219 = vpop.f32.mrf.mxu0
  %220 = vmatprep.mubr.f32.mxu0 0.0
  %221 = vmatmul.mubr.f32.gmra.mxu0 %v127
  %v222 = vpop.f32.mrf.mxu0
  %v223 = vadd.f32 0.0, %v222
  %v224 = vpop.f32.mrf.mxu0
  %225 = vmatprep.mubr.f32.mxu0 0.0
  %226 = vmatmul.mubr.f32.gmra.mxu0 %v130
  %v227 = vpop.f32.mrf.mxu0
  %v228 = vadd.f32 0.0, %v227
  %v229 = vpop.f32.mrf.mxu0
  %230 = vmatprep.mubr.f32.mxu0 0.0
  %231 = vmatmul.mubr.f32.gmra.mxu0 %v133
  %v232 = vpop.f32.mrf.mxu0
  %v233 = vadd.f32 0.0, %v232
  %v234 = vpop.f32.mrf.mxu0
  %235 = vmatprep.mubr.f32.mxu0 0.0
  %236 = vmatmul.mubr.f32.gmra.mxu0 %v136
  %v237 = vpop.f32.mrf.mxu0
  %v238 = vadd.f32 0.0, %v237
  %v239 = vpop.f32.mrf.mxu0
  %240 = vmatprep.mubr.f32.mxu0 0.0
  %241 = vmatmul.mubr.f32.gmra.mxu0 %v139
  %v242 = vpop.f32.mrf.mxu0
  %v243 = vadd.f32 0.0, %v242
  %v244 = vpop.f32.mrf.mxu0
  %245 = vdwg.mxu0
  %vm246 = vcmask 261120
  %v248 = vsel %vm246, 0.0, 0
  %250 = vmatprep.subr.mxu0 0.0
  %251 = vmatpush1.msra.mxu0 0.0
  %252 = vmatprep.subr.mxu0 0.0
  %253 = vmatpush1.msra.mxu0 0.0
  %254 = vmatprep.subr.mxu0 0.0
  %255 = vmatpush1.msra.mxu0 0.0
  %256 = vmatprep.subr.mxu0 0.0
  %257 = vmatpush1.msra.mxu0 0.0
  %258 = vmatprep.subr.mxu0 0.0
  %259 = vmatpush1.msra.mxu0 0.0
  %260 = vmatprep.subr.mxu0 0.0
  %261 = vmatpush1.msra.mxu0 0.0
  %262 = vmatprep.subr.mxu0 0.0
  %263 = vmatpush1.msra.mxu0 0.0
  %264 = vmatprep.subr.mxu0 0.0
  %265 = vmatpush1.msra.mxu0 0.0
  %266 = vmatprep.subr.mxu0 0.0
  %267 = vmatpush1.msra.mxu0 0.0
  %268 = vmatprep.subr.mxu0 0.0
  %269 = vmatpush1.msra.mxu0 0.0
  %270 = vmatprep.subr.mxu0 0.0
  %271 = vmatpush1.msra.mxu0 0.0
  %272 = vmatprep.subr.mxu0 0.0
  %273 = vmatpush1.msra.mxu0 0.0
  %274 = vmatprep.subr.mxu0 0.0
  %275 = vmatpush1.msra.mxu0 %v23
  %276 = vmatprep.subr.mxu0 0.0
  %277 = vmatpush1.msra.mxu0 %v22
  %278 = vmatprep.subr.mxu0 0.0
  %279 = vmatpush1.msra.mxu0 %v21
  %280 = vmatprep.subr.mxu0 0.0
  %281 = vmatpush1.msra.mxu0 %v20
  %282 = vmatprep.subr.mxu0 0.0
  %283 = vmatpush2.msra.mxu0 0.0
  %284 = vmatprep.subr.mxu0 0.0
  %285 = vmatpush2.msra.mxu0 0.0
  %286 = vmatprep.subr.mxu0 0.0
  %287 = vmatpush2.msra.mxu0 0.0
  %288 = vmatprep.subr.mxu0 0.0
  %289 = vmatpush2.msra.mxu0 0.0
  %290 = vmatprep.subr.mxu0 0.0
  %291 = vmatpush2.msra.mxu0 0.0
  %292 = vmatprep.subr.mxu0 0.0
  %293 = vmatpush2.msra.mxu0 0.0
  %294 = vmatprep.subr.mxu0 0.0
  %295 = vmatpush2.msra.mxu0 0.0
  %296 = vmatprep.subr.mxu0 0.0
  %297 = vmatpush2.msra.mxu0 0.0
  %298 = vmatprep.subr.mxu0 0.0
  %299 = vmatpush2.msra.mxu0 0.0
  %300 = vmatprep.subr.mxu0 0.0
  %301 = vmatpush2.msra.mxu0 0.0
  %302 = vmatprep.subr.mxu0 0.0
  %303 = vmatpush2.msra.mxu0 0.0
  %304 = vmatprep.subr.mxu0 0.0
  %305 = vmatpush2.msra.mxu0 0.0
  %306 = vmatprep.subr.mxu0 0.0
  %307 = vmatpush2.msra.mxu0 0.0
  %308 = vmatprep.subr.mxu0 0.0
  %309 = vmatpush2.msra.mxu0 0.0
  %310 = vmatprep.subr.mxu0 0.0
  %311 = vmatpush2.msra.mxu0 0.0
  %312 = vmatprep.subr.mxu0 0.0
  %313 = vmatpush2.msra.mxu0 0.0
  %314 = vmatprep.mubr.f32.mxu0 0.0
  %315 = vmatmul.mubr.f32.gmra.mxu0 %v248
  %v316 = vpop.f32.mrf.mxu0
  %v317 = vadd.f32 0.0, %v316
  %v318 = vpop.f32.mrf.mxu0
  %319 = vdwg.mxu0
  %v320 = vadd.f32 %v208, %v317
  %v321 = vxor.u32 %v320, 2147483648
  %v322 = vmul.f32 %v321, 1.442695
  %v323 = vpow.pop %v322
  %v324 = vadd.f32 %v323, 1.0
  %v325 = vrcp.pop %v324
  %v326 = vmul.f32 1.0, %v325
  %v327 = vmul.f32 %v326, 2.0
  %v328 = vsub.f32 %v327, 1.0
  %v329 = vmul.f32 %v326, 0.0
  %331 = vrot.lane.b32.xlu0 %v328, 64
  %v332 = vpop.permute.xlu0 %331
  %v334 = vmul.f32 %v326, %v332
  %336 = vrot.lane.b32.xlu0 %v334, 32
  %v337 = vpop.permute.xlu0 %336
  %v339 = vadd.f32 %v329, %v337
  %v340 = vtanh.pop %v339
  %342 = vrot.lane.b32.xlu0 %v340, 64
  %v343 = vpop.permute.xlu0 %342
  %v345 = vmul.f32 %v326, %v343
  %347 = vrot.lane.b32.xlu0 %v345, 32
  %v348 = vpop.permute.xlu0 %347
  %v349 = vsel %vm246, %v348, 0
  %351 = vmatprep.subr.mxu0 0.0
  %352 = vmatpush1.msra.mxu0 0.0
  %353 = vmatprep.subr.mxu0 0.0
  %354 = vmatpush1.msra.mxu0 0.0
  %355 = vmatprep.subr.mxu0 0.0
  %356 = vmatpush1.msra.mxu0 0.0
  %357 = vmatprep.subr.mxu0 0.0
  %358 = vmatpush1.msra.mxu0 0.0
  %359 = vmatprep.subr.mxu0 0.0
  %360 = vmatpush1.msra.mxu0 0.0
  %361 = vmatprep.subr.mxu0 0.0
  %362 = vmatpush1.msra.mxu0 0.0
  %363 = vmatprep.subr.mxu0 0.0
  %364 = vmatpush1.msra.mxu0 0.0
  %365 = vmatprep.subr.mxu0 0.0
  %366 = vmatpush1.msra.mxu0 0.0
  %367 = vmatprep.subr.mxu0 0.0
  %368 = vmatpush1.msra.mxu0 0.0
  %369 = vmatprep.subr.mxu0 0.0
  %370 = vmatpush1.msra.mxu0 0.0
  %371 = vmatprep.subr.mxu0 0.0
  %372 = vmatpush1.msra.mxu0 0.0
  %373 = vmatprep.subr.mxu0 0.0
  %374 = vmatpush1.msra.mxu0 0.0
  %375 = vmatprep.subr.mxu0 0.0
  %376 = vmatpush1.msra.mxu0 %v23
  %377 = vmatprep.subr.mxu0 0.0
  %378 = vmatpush1.msra.mxu0 %v22
  %379 = vmatprep.subr.mxu0 0.0
  %380 = vmatpush1.msra.mxu0 %v21
  %381 = vmatprep.subr.mxu0 0.0
  %382 = vmatpush1.msra.mxu0 %v20
  %383 = vmatprep.subr.mxu0 0.0
  %384 = vmatpush2.msra.mxu0 0.0
  %385 = vmatprep.subr.mxu0 0.0
  %386 = vmatpush2.msra.mxu0 0.0
  %387 = vmatprep.subr.mxu0 0.0
  %388 = vmatpush2.msra.mxu0 0.0
  %389 = vmatprep.subr.mxu0 0.0
  %390 = vmatpush2.msra.mxu0 0.0
  %391 = vmatprep.subr.mxu0 0.0
  %392 = vmatpush2.msra.mxu0 0.0
  %393 = vmatprep.subr.mxu0 0.0
  %394 = vmatpush2.msra.mxu0 0.0
  %395 = vmatprep.subr.mxu0 0.0
  %396 = vmatpush2.msra.mxu0 0.0
  %397 = vmatprep.subr.mxu0 0.0
  %398 = vmatpush2.msra.mxu0 0.0
  %399 = vmatprep.subr.mxu0 0.0
  %400 = vmatpush2.msra.mxu0 0.0
  %401 = vmatprep.subr.mxu0 0.0
  %402 = vmatpush2.msra.mxu0 0.0
  %403 = vmatprep.subr.mxu0 0.0
  %404 = vmatpush2.msra.mxu0 0.0
  %405 = vmatprep.subr.mxu0 0.0
  %406 = vmatpush2.msra.mxu0 0.0
  %407 = vmatprep.subr.mxu0 0.0
  %408 = vmatpush2.msra.mxu0 0.0
  %409 = vmatprep.subr.mxu0 0.0
  %410 = vmatpush2.msra.mxu0 0.0
  %411 = vmatprep.subr.mxu0 0.0
  %412 = vmatpush2.msra.mxu0 0.0
  %413 = vmatprep.subr.mxu0 0.0
  %414 = vmatpush2.msra.mxu0 0.0
  %415 = vmatprep.mubr.f32.mxu0 0.0
  %416 = vmatmul.mubr.f32.gmra.mxu0 %v349
  %v417 = vpop.f32.mrf.mxu0
  %v418 = vadd.f32 0.0, %v417
  %v419 = vpop.f32.mrf.mxu0
  %420 = vdwg.mxu0
  %v421 = vadd.f32 %v213, %v418
  %v422 = vxor.u32 %v421, 2147483648
  %v423 = vmul.f32 %v422, 1.442695
  %v424 = vpow.pop %v423
  %v425 = vadd.f32 %v424, 1.0
  %v426 = vrcp.pop %v425
  %v427 = vmul.f32 1.0, %v426
  %v428 = vmul.f32 %v427, 2.0
  %v429 = vsub.f32 %v428, 1.0
  %v430 = vmul.f32 %v427, %v339
  %432 = vrot.lane.b32.xlu0 %v429, 64
  %v433 = vpop.permute.xlu0 %432
  %v435 = vmul.f32 %v427, %v433
  %437 = vrot.lane.b32.xlu0 %v435, 32
  %v438 = vpop.permute.xlu0 %437
  %v440 = vadd.f32 %v430, %v438
  %v441 = vtanh.pop %v440
  %443 = vrot.lane.b32.xlu0 %v441, 64
  %v444 = vpop.permute.xlu0 %443
  %v446 = vmul.f32 %v427, %v444
  %448 = vrot.lane.b32.xlu0 %v446, 32
  %v449 = vpop.permute.xlu0 %448
  %v450 = vsel %vm246, %v449, 0
  %452 = vmatprep.subr.mxu0 0.0
  %453 = vmatpush1.msra.mxu0 0.0
  %454 = vmatprep.subr.mxu0 0.0
  %455 = vmatpush1.msra.mxu0 0.0
  %456 = vmatprep.subr.mxu0 0.0
  %457 = vmatpush1.msra.mxu0 0.0
  %458 = vmatprep.subr.mxu0 0.0
  %459 = vmatpush1.msra.mxu0 0.0
  %460 = vmatprep.subr.mxu0 0.0
  %461 = vmatpush1.msra.mxu0 0.0
  %462 = vmatprep.subr.mxu0 0.0
  %463 = vmatpush1.msra.mxu0 0.0
  %464 = vmatprep.subr.mxu0 0.0
  %465 = vmatpush1.msra.mxu0 0.0
  %466 = vmatprep.subr.mxu0 0.0
  %467 = vmatpush1.msra.mxu0 0.0
  %468 = vmatprep.subr.mxu0 0.0
  %469 = vmatpush1.msra.mxu0 0.0
  %470 = vmatprep.subr.mxu0 0.0
  %471 = vmatpush1.msra.mxu0 0.0
  %472 = vmatprep.subr.mxu0 0.0
  %473 = vmatpush1.msra.mxu0 0.0
  %474 = vmatprep.subr.mxu0 0.0
  %475 = vmatpush1.msra.mxu0 0.0
  %476 = vmatprep.subr.mxu0 0.0
  %477 = vmatpush1.msra.mxu0 %v23
  %478 = vmatprep.subr.mxu0 0.0
  %479 = vmatpush1.msra.mxu0 %v22
  %480 = vmatprep.subr.mxu0 0.0
  %481 = vmatpush1.msra.mxu0 %v21
  %482 = vmatprep.subr.mxu0 0.0
  %483 = vmatpush1.msra.mxu0 %v20
  %484 = vmatprep.subr.mxu0 0.0
  %485 = vmatpush2.msra.mxu0 0.0
  %486 = vmatprep.subr.mxu0 0.0
  %487 = vmatpush2.msra.mxu0 0.0
  %488 = vmatprep.subr.mxu0 0.0
  %489 = vmatpush2.msra.mxu0 0.0
  %490 = vmatprep.subr.mxu0 0.0
  %491 = vmatpush2.msra.mxu0 0.0
  %492 = vmatprep.subr.mxu0 0.0
  %493 = vmatpush2.msra.mxu0 0.0
  %494 = vmatprep.subr.mxu0 0.0
  %495 = vmatpush2.msra.mxu0 0.0
  %496 = vmatprep.subr.mxu0 0.0
  %497 = vmatpush2.msra.mxu0 0.0
  %498 = vmatprep.subr.mxu0 0.0
  %499 = vmatpush2.msra.mxu0 0.0
  %500 = vmatprep.subr.mxu0 0.0
  %501 = vmatpush2.msra.mxu0 0.0
  %502 = vmatprep.subr.mxu0 0.0
  %503 = vmatpush2.msra.mxu0 0.0
  %504 = vmatprep.subr.mxu0 0.0
  %505 = vmatpush2.msra.mxu0 0.0
  %506 = vmatprep.subr.mxu0 0.0
  %507 = vmatpush2.msra.mxu0 0.0
  %508 = vmatprep.subr.mxu0 0.0
  %509 = vmatpush2.msra.mxu0 0.0
  %510 = vmatprep.subr.mxu0 0.0
  %511 = vmatpush2.msra.mxu0 0.0
  %512 = vmatprep.subr.mxu0 0.0
  %513 = vmatpush2.msra.mxu0 0.0
  %514 = vmatprep.subr.mxu0 0.0
  %515 = vmatpush2.msra.mxu0 0.0
  %516 = vmatprep.mubr.f32.mxu0 0.0
  %517 = vmatmul.mubr.f32.gmra.mxu0 %v450
  %v518 = vpop.f32.mrf.mxu0
  %v519 = vadd.f32 0.0, %v518
  %v520 = vpop.f32.mrf.mxu0
  %521 = vdwg.mxu0
  %v522 = vadd.f32 %v218, %v519
  %v523 = vxor.u32 %v522, 2147483648
  %v524 = vmul.f32 %v523, 1.442695
  %v525 = vpow.pop %v524
  %v526 = vadd.f32 %v525, 1.0
  %v527 = vrcp.pop %v526
  %v528 = vmul.f32 1.0, %v527
  %v529 = vmul.f32 %v528, 2.0
  %v530 = vsub.f32 %v529, 1.0
  %v531 = vmul.f32 %v528, %v440
  %533 = vrot.lane.b32.xlu0 %v530, 64
  %v534 = vpop.permute.xlu0 %533
  %v536 = vmul.f32 %v528, %v534
  %538 = vrot.lane.b32.xlu0 %v536, 32
  %v539 = vpop.permute.xlu0 %538
  %v541 = vadd.f32 %v531, %v539
  %v542 = vtanh.pop %v541
  %544 = vrot.lane.b32.xlu0 %v542, 64
  %v545 = vpop.permute.xlu0 %544
  %v547 = vmul.f32 %v528, %v545
  %549 = vrot.lane.b32.xlu0 %v547, 32
  %v550 = vpop.permute.xlu0 %549
  %v551 = vsel %vm246, %v550, 0
  %553 = vmatprep.subr.mxu0 0.0
  %554 = vmatpush1.msra.mxu0 0.0
  %555 = vmatprep.subr.mxu0 0.0
  %556 = vmatpush1.msra.mxu0 0.0
  %557 = vmatprep.subr.mxu0 0.0
  %558 = vmatpush1.msra.mxu0 0.0
  %559 = vmatprep.subr.mxu0 0.0
  %560 = vmatpush1.msra.mxu0 0.0
  %561 = vmatprep.subr.mxu0 0.0
  %562 = vmatpush1.msra.mxu0 0.0
  %563 = vmatprep.subr.mxu0 0.0
  %564 = vmatpush1.msra.mxu0 0.0
  %565 = vmatprep.subr.mxu0 0.0
  %566 = vmatpush1.msra.mxu0 0.0
  %567 = vmatprep.subr.mxu0 0.0
  %568 = vmatpush1.msra.mxu0 0.0
  %569 = vmatprep.subr.mxu0 0.0
  %570 = vmatpush1.msra.mxu0 0.0
  %571 = vmatprep.subr.mxu0 0.0
  %572 = vmatpush1.msra.mxu0 0.0
  %573 = vmatprep.subr.mxu0 0.0
  %574 = vmatpush1.msra.mxu0 0.0
  %575 = vmatprep.subr.mxu0 0.0
  %576 = vmatpush1.msra.mxu0 0.0
  %577 = vmatprep.subr.mxu0 0.0
  %578 = vmatpush1.msra.mxu0 %v23
  %579 = vmatprep.subr.mxu0 0.0
  %580 = vmatpush1.msra.mxu0 %v22
  %581 = vmatprep.subr.mxu0 0.0
  %582 = vmatpush1.msra.mxu0 %v21
  %583 = vmatprep.subr.mxu0 0.0
  %584 = vmatpush1.msra.mxu0 %v20
  %585 = vmatprep.subr.mxu0 0.0
  %586 = vmatpush2.msra.mxu0 0.0
  %587 = vmatprep.subr.mxu0 0.0
  %588 = vmatpush2.msra.mxu0 0.0
  %589 = vmatprep.subr.mxu0 0.0
  %590 = vmatpush2.msra.mxu0 0.0
  %591 = vmatprep.subr.mxu0 0.0
  %592 = vmatpush2.msra.mxu0 0.0
  %593 = vmatprep.subr.mxu0 0.0
  %594 = vmatpush2.msra.mxu0 0.0
  %595 = vmatprep.subr.mxu0 0.0
  %596 = vmatpush2.msra.mxu0 0.0
  %597 = vmatprep.subr.mxu0 0.0
  %598 = vmatpush2.msra.mxu0 0.0
  %599 = vmatprep.subr.mxu0 0.0
  %600 = vmatpush2.msra.mxu0 0.0
  %601 = vmatprep.subr.mxu0 0.0
  %602 = vmatpush2.msra.mxu0 0.0
  %603 = vmatprep.subr.mxu0 0.0
  %604 = vmatpush2.msra.mxu0 0.0
  %605 = vmatprep.subr.mxu0 0.0
  %606 = vmatpush2.msra.mxu0 0.0
  %607 = vmatprep.subr.mxu0 0.0
  %608 = vmatpush2.msra.mxu0 0.0
  %609 = vmatprep.subr.mxu0 0.0
  %610 = vmatpush2.msra.mxu0 0.0
  %611 = vmatprep.subr.mxu0 0.0
  %612 = vmatpush2.msra.mxu0 0.0
  %613 = vmatprep.subr.mxu0 0.0
  %614 = vmatpush2.msra.mxu0 0.0
  %615 = vmatprep.subr.mxu0 0.0
  %616 = vmatpush2.msra.mxu0 0.0
  %617 = vmatprep.mubr.f32.mxu0 0.0
  %618 = vmatmul.mubr.f32.gmra.mxu0 %v551
  %v619 = vpop.f32.mrf.mxu0
  %v620 = vadd.f32 0.0, %v619
  %v621 = vpop.f32.mrf.mxu0
  %622 = vdwg.mxu0
  %v623 = vadd.f32 %v223, %v620
  %v624 = vxor.u32 %v623, 2147483648
  %v625 = vmul.f32 %v624, 1.442695
  %v626 = vpow.pop %v625
  %v627 = vadd.f32 %v626, 1.0
  %v628 = vrcp.pop %v627
  %v629 = vmul.f32 1.0, %v628
  %v630 = vmul.f32 %v629, 2.0
  %v631 = vsub.f32 %v630, 1.0
  %v632 = vmul.f32 %v629, %v541
  %634 = vrot.lane.b32.xlu0 %v631, 64
  %v635 = vpop.permute.xlu0 %634
  %v637 = vmul.f32 %v629, %v635
  %639 = vrot.lane.b32.xlu0 %v637, 32
  %v640 = vpop.permute.xlu0 %639
  %v642 = vadd.f32 %v632, %v640
  %v643 = vtanh.pop %v642
  %645 = vrot.lane.b32.xlu0 %v643, 64
  %v646 = vpop.permute.xlu0 %645
  %v648 = vmul.f32 %v629, %v646
  %650 = vrot.lane.b32.xlu0 %v648, 32
  %v651 = vpop.permute.xlu0 %650
  %v652 = vsel %vm246, %v651, 0
  %654 = vmatprep.subr.mxu0 0.0
  %655 = vmatpush1.msra.mxu0 0.0
  %656 = vmatprep.subr.mxu0 0.0
  %657 = vmatpush1.msra.mxu0 0.0
  %658 = vmatprep.subr.mxu0 0.0
  %659 = vmatpush1.msra.mxu0 0.0
  %660 = vmatprep.subr.mxu0 0.0
  %661 = vmatpush1.msra.mxu0 0.0
  %662 = vmatprep.subr.mxu0 0.0
  %663 = vmatpush1.msra.mxu0 0.0
  %664 = vmatprep.subr.mxu0 0.0
  %665 = vmatpush1.msra.mxu0 0.0
  %666 = vmatprep.subr.mxu0 0.0
  %667 = vmatpush1.msra.mxu0 0.0
  %668 = vmatprep.subr.mxu0 0.0
  %669 = vmatpush1.msra.mxu0 0.0
  %670 = vmatprep.subr.mxu0 0.0
  %671 = vmatpush1.msra.mxu0 0.0
  %672 = vmatprep.subr.mxu0 0.0
  %673 = vmatpush1.msra.mxu0 0.0
  %674 = vmatprep.subr.mxu0 0.0
  %675 = vmatpush1.msra.mxu0 0.0
  %676 = vmatprep.subr.mxu0 0.0
  %677 = vmatpush1.msra.mxu0 0.0
  %678 = vmatprep.subr.mxu0 0.0
  %679 = vmatpush1.msra.mxu0 %v23
  %680 = vmatprep.subr.mxu0 0.0
  %681 = vmatpush1.msra.mxu0 %v22
  %682 = vmatprep.subr.mxu0 0.0
  %683 = vmatpush1.msra.mxu0 %v21
  %684 = vmatprep.subr.mxu0 0.0
  %685 = vmatpush1.msra.mxu0 %v20
  %686 = vmatprep.subr.mxu0 0.0
  %687 = vmatpush2.msra.mxu0 0.0
  %688 = vmatprep.subr.mxu0 0.0
  %689 = vmatpush2.msra.mxu0 0.0
  %690 = vmatprep.subr.mxu0 0.0
  %691 = vmatpush2.msra.mxu0 0.0
  %692 = vmatprep.subr.mxu0 0.0
  %693 = vmatpush2.msra.mxu0 0.0
  %694 = vmatprep.subr.mxu0 0.0
  %695 = vmatpush2.msra.mxu0 0.0
  %696 = vmatprep.subr.mxu0 0.0
  %697 = vmatpush2.msra.mxu0 0.0
  %698 = vmatprep.subr.mxu0 0.0
  %699 = vmatpush2.msra.mxu0 0.0
  %700 = vmatprep.subr.mxu0 0.0
  %701 = vmatpush2.msra.mxu0 0.0
  %702 = vmatprep.subr.mxu0 0.0
  %703 = vmatpush2.msra.mxu0 0.0
  %704 = vmatprep.subr.mxu0 0.0
  %705 = vmatpush2.msra.mxu0 0.0
  %706 = vmatprep.subr.mxu0 0.0
  %707 = vmatpush2.msra.mxu0 0.0
  %708 = vmatprep.subr.mxu0 0.0
  %709 = vmatpush2.msra.mxu0 0.0
  %710 = vmatprep.subr.mxu0 0.0
  %711 = vmatpush2.msra.mxu0 0.0
  %712 = vmatprep.subr.mxu0 0.0
  %713 = vmatpush2.msra.mxu0 0.0
  %714 = vmatprep.subr.mxu0 0.0
  %715 = vmatpush2.msra.mxu0 0.0
  %716 = vmatprep.subr.mxu0 0.0
  %717 = vmatpush2.msra.mxu0 0.0
  %718 = vmatprep.mubr.f32.mxu0 0.0
  %719 = vmatmul.mubr.f32.gmra.mxu0 %v652
  %v720 = vpop.f32.mrf.mxu0
  %v721 = vadd.f32 0.0, %v720
  %v722 = vpop.f32.mrf.mxu0
  %723 = vdwg.mxu0
  %v724 = vadd.f32 %v228, %v721
  %v725 = vxor.u32 %v724, 2147483648
  %v726 = vmul.f32 %v725, 1.442695
  %v727 = vpow.pop %v726
  %v728 = vadd.f32 %v727, 1.0
  %v729 = vrcp.pop %v728
  %v730 = vmul.f32 1.0, %v729
  %v731 = vmul.f32 %v730, 2.0
  %v732 = vsub.f32 %v731, 1.0
  %v733 = vmul.f32 %v730, %v642
  %735 = vrot.lane.b32.xlu0 %v732, 64
  %v736 = vpop.permute.xlu0 %735
  %v738 = vmul.f32 %v730, %v736
  %740 = vrot.lane.b32.xlu0 %v738, 32
  %v741 = vpop.permute.xlu0 %740
  %v743 = vadd.f32 %v733, %v741
  %v744 = vtanh.pop %v743
  %746 = vrot.lane.b32.xlu0 %v744, 64
  %v747 = vpop.permute.xlu0 %746
  %v749 = vmul.f32 %v730, %v747
  %751 = vrot.lane.b32.xlu0 %v749, 32
  %v752 = vpop.permute.xlu0 %751
  %v753 = vsel %vm246, %v752, 0
  %755 = vmatprep.subr.mxu0 0.0
  %756 = vmatpush1.msra.mxu0 0.0
  %757 = vmatprep.subr.mxu0 0.0
  %758 = vmatpush1.msra.mxu0 0.0
  %759 = vmatprep.subr.mxu0 0.0
  %760 = vmatpush1.msra.mxu0 0.0
  %761 = vmatprep.subr.mxu0 0.0
  %762 = vmatpush1.msra.mxu0 0.0
  %763 = vmatprep.subr.mxu0 0.0
  %764 = vmatpush1.msra.mxu0 0.0
  %765 = vmatprep.subr.mxu0 0.0
  %766 = vmatpush1.msra.mxu0 0.0
  %767 = vmatprep.subr.mxu0 0.0
  %768 = vmatpush1.msra.mxu0 0.0
  %769 = vmatprep.subr.mxu0 0.0
  %770 = vmatpush1.msra.mxu0 0.0
  %771 = vmatprep.subr.mxu0 0.0
  %772 = vmatpush1.msra.mxu0 0.0
  %773 = vmatprep.subr.mxu0 0.0
  %774 = vmatpush1.msra.mxu0 0.0
  %775 = vmatprep.subr.mxu0 0.0
  %776 = vmatpush1.msra.mxu0 0.0
  %777 = vmatprep.subr.mxu0 0.0
  %778 = vmatpush1.msra.mxu0 0.0
  %779 = vmatprep.subr.mxu0 0.0
  %780 = vmatpush1.msra.mxu0 %v23
  %781 = vmatprep.subr.mxu0 0.0
  %782 = vmatpush1.msra.mxu0 %v22
  %783 = vmatprep.subr.mxu0 0.0
  %784 = vmatpush1.msra.mxu0 %v21
  %785 = vmatprep.subr.mxu0 0.0
  %786 = vmatpush1.msra.mxu0 %v20
  %787 = vmatprep.subr.mxu0 0.0
  %788 = vmatpush2.msra.mxu0 0.0
  %789 = vmatprep.subr.mxu0 0.0
  %790 = vmatpush2.msra.mxu0 0.0
  %791 = vmatprep.subr.mxu0 0.0
  %792 = vmatpush2.msra.mxu0 0.0
  %793 = vmatprep.subr.mxu0 0.0
  %794 = vmatpush2.msra.mxu0 0.0
  %795 = vmatprep.subr.mxu0 0.0
  %796 = vmatpush2.msra.mxu0 0.0
  %797 = vmatprep.subr.mxu0 0.0
  %798 = vmatpush2.msra.mxu0 0.0
  %799 = vmatprep.subr.mxu0 0.0
  %800 = vmatpush2.msra.mxu0 0.0
  %801 = vmatprep.subr.mxu0 0.0
  %802 = vmatpush2.msra.mxu0 0.0
  %803 = vmatprep.subr.mxu0 0.0
  %804 = vmatpush2.msra.mxu0 0.0
  %805 = vmatprep.subr.mxu0 0.0
  %806 = vmatpush2.msra.mxu0 0.0
  %807 = vmatprep.subr.mxu0 0.0
  %808 = vmatpush2.msra.mxu0 0.0
  %809 = vmatprep.subr.mxu0 0.0
  %810 = vmatpush2.msra.mxu0 0.0
  %811 = vmatprep.subr.mxu0 0.0
  %812 = vmatpush2.msra.mxu0 0.0
  %813 = vmatprep.subr.mxu0 0.0
  %814 = vmatpush2.msra.mxu0 0.0
  %815 = vmatprep.subr.mxu0 0.0
  %816 = vmatpush2.msra.mxu0 0.0
  %817 = vmatprep.subr.mxu0 0.0
  %818 = vmatpush2.msra.mxu0 0.0
  %819 = vmatprep.mubr.f32.mxu0 0.0
  %820 = vmatmul.mubr.f32.gmra.mxu0 %v753
  %v821 = vpop.f32.mrf.mxu0
  %v822 = vadd.f32 0.0, %v821
  %v823 = vpop.f32.mrf.mxu0
  %824 = vdwg.mxu0
  %v825 = vadd.f32 %v233, %v822
  %v826 = vxor.u32 %v825, 2147483648
  %v827 = vmul.f32 %v826, 1.442695
  %v828 = vpow.pop %v827
  %v829 = vadd.f32 %v828, 1.0
  %v830 = vrcp.pop %v829
  %v831 = vmul.f32 1.0, %v830
  %v832 = vmul.f32 %v831, 2.0
  %v833 = vsub.f32 %v832, 1.0
  %v834 = vmul.f32 %v831, %v743
  %836 = vrot.lane.b32.xlu0 %v833, 64
  %v837 = vpop.permute.xlu0 %836
  %v839 = vmul.f32 %v831, %v837
  %841 = vrot.lane.b32.xlu0 %v839, 32
  %v842 = vpop.permute.xlu0 %841
  %v844 = vadd.f32 %v834, %v842
  %v845 = vtanh.pop %v844
  %847 = vrot.lane.b32.xlu0 %v845, 64
  %v848 = vpop.permute.xlu0 %847
  %v850 = vmul.f32 %v831, %v848
  %852 = vrot.lane.b32.xlu0 %v850, 32
  %v853 = vpop.permute.xlu0 %852
  %v854 = vsel %vm246, %v853, 0
  %856 = vmatprep.subr.mxu0 0.0
  %857 = vmatpush1.msra.mxu0 0.0
  %858 = vmatprep.subr.mxu0 0.0
  %859 = vmatpush1.msra.mxu0 0.0
  %860 = vmatprep.subr.mxu0 0.0
  %861 = vmatpush1.msra.mxu0 0.0
  %862 = vmatprep.subr.mxu0 0.0
  %863 = vmatpush1.msra.mxu0 0.0
  %864 = vmatprep.subr.mxu0 0.0
  %865 = vmatpush1.msra.mxu0 0.0
  %866 = vmatprep.subr.mxu0 0.0
  %867 = vmatpush1.msra.mxu0 0.0
  %868 = vmatprep.subr.mxu0 0.0
  %869 = vmatpush1.msra.mxu0 0.0
  %870 = vmatprep.subr.mxu0 0.0
  %871 = vmatpush1.msra.mxu0 0.0
  %872 = vmatprep.subr.mxu0 0.0
  %873 = vmatpush1.msra.mxu0 0.0
  %874 = vmatprep.subr.mxu0 0.0
  %875 = vmatpush1.msra.mxu0 0.0
  %876 = vmatprep.subr.mxu0 0.0
  %877 = vmatpush1.msra.mxu0 0.0
  %878 = vmatprep.subr.mxu0 0.0
  %879 = vmatpush1.msra.mxu0 0.0
  %880 = vmatprep.subr.mxu0 0.0
  %881 = vmatpush1.msra.mxu0 %v23
  %882 = vmatprep.subr.mxu0 0.0
  %883 = vmatpush1.msra.mxu0 %v22
  %884 = vmatprep.subr.mxu0 0.0
  %885 = vmatpush1.msra.mxu0 %v21
  %886 = vmatprep.subr.mxu0 0.0
  %887 = vmatpush1.msra.mxu0 %v20
  %888 = vmatprep.subr.mxu0 0.0
  %889 = vmatpush2.msra.mxu0 0.0
  %890 = vmatprep.subr.mxu0 0.0
  %891 = vmatpush2.msra.mxu0 0.0
  %892 = vmatprep.subr.mxu0 0.0
  %893 = vmatpush2.msra.mxu0 0.0
  %894 = vmatprep.subr.mxu0 0.0
  %895 = vmatpush2.msra.mxu0 0.0
  %896 = vmatprep.subr.mxu0 0.0
  %897 = vmatpush2.msra.mxu0 0.0
  %898 = vmatprep.subr.mxu0 0.0
  %899 = vmatpush2.msra.mxu0 0.0
  %900 = vmatprep.subr.mxu0 0.0
  %901 = vmatpush2.msra.mxu0 0.0
  %902 = vmatprep.subr.mxu0 0.0
  %903 = vmatpush2.msra.mxu0 0.0
  %904 = vmatprep.subr.mxu0 0.0
  %905 = vmatpush2.msra.mxu0 0.0
  %906 = vmatprep.subr.mxu0 0.0
  %907 = vmatpush2.msra.mxu0 0.0
  %908 = vmatprep.subr.mxu0 0.0
  %909 = vmatpush2.msra.mxu0 0.0
  %910 = vmatprep.subr.mxu0 0.0
  %911 = vmatpush2.msra.mxu0 0.0
  %912 = vmatprep.subr.mxu0 0.0
  %913 = vmatpush2.msra.mxu0 0.0
  %914 = vmatprep.subr.mxu0 0.0
  %915 = vmatpush2.msra.mxu0 0.0
  %916 = vmatprep.subr.mxu0 0.0
  %917 = vmatpush2.msra.mxu0 0.0
  %918 = vmatprep.subr.mxu0 0.0
  %919 = vmatpush2.msra.mxu0 0.0
  %920 = vmatprep.mubr.f32.mxu0 0.0
  %921 = vmatmul.mubr.f32.gmra.mxu0 %v854
  %v922 = vpop.f32.mrf.mxu0
  %v923 = vadd.f32 0.0, %v922
  %v924 = vpop.f32.mrf.mxu0
  %925 = vdwg.mxu0
  %v926 = vadd.f32 %v238, %v923
  %v927 = vxor.u32 %v926, 2147483648
  %v928 = vmul.f32 %v927, 1.442695
  %v929 = vpow.pop %v928
  %v930 = vadd.f32 %v929, 1.0
  %v931 = vrcp.pop %v930
  %v932 = vmul.f32 1.0, %v931
  %v933 = vmul.f32 %v932, 2.0
  %v934 = vsub.f32 %v933, 1.0
  %v935 = vmul.f32 %v932, %v844
  %937 = vrot.lane.b32.xlu0 %v934, 64
  %v938 = vpop.permute.xlu0 %937
  %v940 = vmul.f32 %v932, %v938
  %942 = vrot.lane.b32.xlu0 %v940, 32
  %v943 = vpop.permute.xlu0 %942
  %v945 = vadd.f32 %v935, %v943
  %v946 = vtanh.pop %v945
  %948 = vrot.lane.b32.xlu0 %v946, 64
  %v949 = vpop.permute.xlu0 %948
  %v951 = vmul.f32 %v932, %v949
  %953 = vrot.lane.b32.xlu0 %v951, 32
  %v954 = vpop.permute.xlu0 %953
  %v955 = vsel %vm246, %v954, 0
  %957 = vmatprep.subr.mxu0 0.0
  %958 = vmatpush1.msra.mxu0 0.0
  %959 = vmatprep.subr.mxu0 0.0
  %960 = vmatpush1.msra.mxu0 0.0
  %961 = vmatprep.subr.mxu0 0.0
  %962 = vmatpush1.msra.mxu0 0.0
  %963 = vmatprep.subr.mxu0 0.0
  %964 = vmatpush1.msra.mxu0 0.0
  %965 = vmatprep.subr.mxu0 0.0
  %966 = vmatpush1.msra.mxu0 0.0
  %967 = vmatprep.subr.mxu0 0.0
  %968 = vmatpush1.msra.mxu0 0.0
  %969 = vmatprep.subr.mxu0 0.0
  %970 = vmatpush1.msra.mxu0 0.0
  %971 = vmatprep.subr.mxu0 0.0
  %972 = vmatpush1.msra.mxu0 0.0
  %973 = vmatprep.subr.mxu0 0.0
  %974 = vmatpush1.msra.mxu0 0.0
  %975 = vmatprep.subr.mxu0 0.0
  %976 = vmatpush1.msra.mxu0 0.0
  %977 = vmatprep.subr.mxu0 0.0
  %978 = vmatpush1.msra.mxu0 0.0
  %979 = vmatprep.subr.mxu0 0.0
  %980 = vmatpush1.msra.mxu0 0.0
  %981 = vmatprep.subr.mxu0 0.0
  %982 = vmatpush1.msra.mxu0 %v23
  %983 = vmatprep.subr.mxu0 0.0
  %984 = vmatpush1.msra.mxu0 %v22
  %985 = vmatprep.subr.mxu0 0.0
  %986 = vmatpush1.msra.mxu0 %v21
  %987 = vmatprep.subr.mxu0 0.0
  %988 = vmatpush1.msra.mxu0 %v20
  %989 = vmatprep.subr.mxu0 0.0
  %990 = vmatpush2.msra.mxu0 0.0
  %991 = vmatprep.subr.mxu0 0.0
  %992 = vmatpush2.msra.mxu0 0.0
  %993 = vmatprep.subr.mxu0 0.0
  %994 = vmatpush2.msra.mxu0 0.0
  %995 = vmatprep.subr.mxu0 0.0
  %996 = vmatpush2.msra.mxu0 0.0
  %997 = vmatprep.subr.mxu0 0.0
  %998 = vmatpush2.msra.mxu0 0.0
  %999 = vmatprep.subr.mxu0 0.0
  %1000 = vmatpush2.msra.mxu0 0.0
  %1001 = vmatprep.subr.mxu0 0.0
  %1002 = vmatpush2.msra.mxu0 0.0
  %1003 = vmatprep.subr.mxu0 0.0
  %1004 = vmatpush2.msra.mxu0 0.0
  %1005 = vmatprep.subr.mxu0 0.0
  %1006 = vmatpush2.msra.mxu0 0.0
  %1007 = vmatprep.subr.mxu0 0.0
  %1008 = vmatpush2.msra.mxu0 0.0
  %1009 = vmatprep.subr.mxu0 0.0
  %1010 = vmatpush2.msra.mxu0 0.0
  %1011 = vmatprep.subr.mxu0 0.0
  %1012 = vmatpush2.msra.mxu0 0.0
  %1013 = vmatprep.subr.mxu0 0.0
  %1014 = vmatpush2.msra.mxu0 0.0
  %1015 = vmatprep.subr.mxu0 0.0
  %1016 = vmatpush2.msra.mxu0 0.0
  %1017 = vmatprep.subr.mxu0 0.0
  %1018 = vmatpush2.msra.mxu0 0.0
  %1019 = vmatprep.subr.mxu0 0.0
  %1020 = vmatpush2.msra.mxu0 0.0
  %1021 = vmatprep.mubr.f32.mxu0 0.0
  %1022 = vmatmul.mubr.f32.gmra.mxu0 %v955
  %v1023 = vpop.f32.mrf.mxu0
  %v1024 = vadd.f32 0.0, %v1023
  %v1025 = vpop.f32.mrf.mxu0
  %1026 = vdwg.mxu0
  %v1027 = vadd.f32 %v243, %v1024
  %v1028 = vxor.u32 %v1027, 2147483648
  %v1029 = vmul.f32 %v1028, 1.442695
  %v1030 = vpow.pop %v1029
  %v1031 = vadd.f32 %v1030, 1.0
  %v1032 = vrcp.pop %v1031
  %v1033 = vmul.f32 1.0, %v1032
  %v1034 = vmul.f32 %v1033, 2.0
  %v1035 = vsub.f32 %v1034, 1.0
  %v1036 = vmul.f32 %v1033, %v945
  %1038 = vrot.lane.b32.xlu0 %v1035, 64
  %v1039 = vpop.permute.xlu0 %1038
  %v1041 = vmul.f32 %v1033, %v1039
  %1043 = vrot.lane.b32.xlu0 %v1041, 32
  %v1044 = vpop.permute.xlu0 %1043
  %v1046 = vadd.f32 %v1036, %v1044
  %v1047 = vtanh.pop %v1046
  %1049 = vrot.lane.b32.xlu0 %v1047, 64
  %v1050 = vpop.permute.xlu0 %1049
  %v1052 = vmul.f32 %v1033, %v1050
  %v1053 = vld [vmem:[%s3] sm:$0xff]
  %v1054 = vld [vmem:[%s3 + $0x8] sm:$0xff]
  %v1055 = vld [vmem:[%s3 + $0x10] sm:$0xff]
  %v1056 = vld [vmem:[%s3 + $0x18] sm:$0xff]
  %v1057 = vld [vmem:[%s4] sm:$0x1]
  %v1059 = vlaneseq
  %v1060 = vshrl.u32 %v1059, 7
  %v1061 = vsub.s32 0, %v1060
  %v1062 = vrot.slane %v1057, %v1061
  %1065 = vrot.lane.b32.xlu0 %v1052, 32
  %v1066 = vpop.permute.xlu0 %1065
  %v1067 = vsel %vm246, %v1066, 0
  %1069 = vmatprep.subr.mxu0 0.0
  %1070 = vmatpush1.msra.mxu0 0.0
  %1071 = vmatprep.subr.mxu0 0.0
  %1072 = vmatpush1.msra.mxu0 0.0
  %1073 = vmatprep.subr.mxu0 0.0
  %1074 = vmatpush1.msra.mxu0 0.0
  %1075 = vmatprep.subr.mxu0 0.0
  %1076 = vmatpush1.msra.mxu0 0.0
  %1077 = vmatprep.subr.mxu0 0.0
  %1078 = vmatpush1.msra.mxu0 0.0
  %1079 = vmatprep.subr.mxu0 0.0
  %1080 = vmatpush1.msra.mxu0 0.0
  %1081 = vmatprep.subr.mxu0 0.0
  %1082 = vmatpush1.msra.mxu0 0.0
  %1083 = vmatprep.subr.mxu0 0.0
  %1084 = vmatpush1.msra.mxu0 0.0
  %1085 = vmatprep.subr.mxu0 0.0
  %1086 = vmatpush1.msra.mxu0 0.0
  %1087 = vmatprep.subr.mxu0 0.0
  %1088 = vmatpush1.msra.mxu0 0.0
  %1089 = vmatprep.subr.mxu0 0.0
  %1090 = vmatpush1.msra.mxu0 0.0
  %1091 = vmatprep.subr.mxu0 0.0
  %1092 = vmatpush1.msra.mxu0 0.0
  %1093 = vmatprep.subr.mxu0 0.0
  %1094 = vmatpush1.msra.mxu0 %v1056
  %1095 = vmatprep.subr.mxu0 0.0
  %1096 = vmatpush1.msra.mxu0 %v1055
  %1097 = vmatprep.subr.mxu0 0.0
  %1098 = vmatpush1.msra.mxu0 %v1054
  %1099 = vmatprep.subr.mxu0 0.0
  %1100 = vmatpush1.msra.mxu0 %v1053
  %1101 = vmatprep.subr.mxu0 0.0
  %1102 = vmatpush2.msra.mxu0 0.0
  %1103 = vmatprep.subr.mxu0 0.0
  %1104 = vmatpush2.msra.mxu0 0.0
  %1105 = vmatprep.subr.mxu0 0.0
  %1106 = vmatpush2.msra.mxu0 0.0
  %1107 = vmatprep.subr.mxu0 0.0
  %1108 = vmatpush2.msra.mxu0 0.0
  %1109 = vmatprep.subr.mxu0 0.0
  %1110 = vmatpush2.msra.mxu0 0.0
  %1111 = vmatprep.subr.mxu0 0.0
  %1112 = vmatpush2.msra.mxu0 0.0
  %1113 = vmatprep.subr.mxu0 0.0
  %1114 = vmatpush2.msra.mxu0 0.0
  %1115 = vmatprep.subr.mxu0 0.0
  %1116 = vmatpush2.msra.mxu0 0.0
  %1117 = vmatprep.subr.mxu0 0.0
  %1118 = vmatpush2.msra.mxu0 0.0
  %1119 = vmatprep.subr.mxu0 0.0
  %1120 = vmatpush2.msra.mxu0 0.0
  %1121 = vmatprep.subr.mxu0 0.0
  %1122 = vmatpush2.msra.mxu0 0.0
  %1123 = vmatprep.subr.mxu0 0.0
  %1124 = vmatpush2.msra.mxu0 0.0
  %1125 = vmatprep.subr.mxu0 0.0
  %1126 = vmatpush2.msra.mxu0 0.0
  %1127 = vmatprep.subr.mxu0 0.0
  %1128 = vmatpush2.msra.mxu0 0.0
  %1129 = vmatprep.subr.mxu0 0.0
  %1130 = vmatpush2.msra.mxu0 0.0
  %1131 = vmatprep.subr.mxu0 0.0
  %1132 = vmatpush2.msra.mxu0 0.0
  %1133 = vmatprep.mubr.f32.mxu0 0.0
  %1134 = vmatmul.mubr.f32.gmra.mxu0 %v1067
  %v1135 = vpop.f32.mrf.mxu0
  %v1136 = vadd.f32 %v1062, %v1135
  %v1137 = vpop.f32.mrf.mxu0
  %1138 = vdwg.mxu0
  %1139 = vst [vmem:[%s5] sm:$0xff] %v1136
  // Predicated region
  $region22: #{lstm_emotion_classifier.1} parent=0 // pred_check
    _
  $region23: #{lstm_emotion_classifier.1} parent=0 // pred_check_branch
    %1141 = sbr.rel (0) target = $region25
  $region24: #{lstm_emotion_classifier.1} parent=0 // pred_region
    _
  $region25: #{lstm_emotion_classifier.1} parent=0 // pred_fallthru
    _
  // Predicated region
  $region26: #{lstm_emotion_classifier.1} parent=0 // pred_check
    _
  $region27: #{lstm_emotion_classifier.1} parent=0 // pred_check_branch
    %1143 = sbr.rel (0) target = $region29
  $region28: #{lstm_emotion_classifier.1} parent=0 // pred_region
    _
  $region29: #{lstm_emotion_classifier.1} parent=0 // pred_fallthru
    _

</llo_original>
